<compile_context>
chip_gen: v7x
topology: tpu7x:2x2x1
jax: 0.10.0
libtpu: 0.0.40
codegen_flags: <defaults>
</compile_context>

<pallas_src>
import functools
import math

import jax
import jax.numpy as jnp
from jax.experimental import pallas as pl
from jax.experimental.pallas import tpu as pltpu


def _pixel_shuffle_kernel(x_ref, o_ref, *, scale_num, n_out):
    # x_ref: (tb, tn, C) input tile; o_ref: (tb, scale_num, tn, n_out) output
    # tile.  Pure copy: slice the lane (channel) axis into nOut-wide windows
    # and drop each into its `s` plane.  Each load is immediately consumed by
    # its store, so live ranges stay one vreg deep and the copy hides under
    # the DMA stream (the kernel is HBM-bandwidth bound).
    for s in range(scale_num):
        o_ref[:, s, :, :] = x_ref[:, :, s * n_out:(s + 1) * n_out]


def _physical_vmem_bytes():
    """Best-effort physical VMEM per TensorCore; conservative fallback = v7x (64 MiB)."""
    try:
        info = pltpu.get_tpu_info()
        v = getattr(info, "vmem_capacity_bytes", None)
        if v:
            return int(v)
    except Exception:
        pass
    return 64 * 1024 * 1024


def _pick_tiles(B, N, C, itemsize, tile_budget):
    """Choose (tb, tn): batch / row extents of one (tb, tn, C) input tile.

    * tn is sublane-aligned for the dtype (8 rows f32, 16 bf16, 32 int8/fp8)
      unless it spans the whole N axis (then the full-dim rule applies).
    * cdiv tiling is used downstream, so tn / tb need not divide N / B.
    """
    align = max(8, 32 // itemsize)            # dtype-aware sublane packing
    row_bytes = C * itemsize

    if N * row_bytes <= tile_budget or N <= align:
        tn = N
        tb = max(1, min(B, tile_budget // max(1, N * row_bytes)))
    else:
        tn = max(align, (tile_budget // row_bytes) // align * align)
        tb = 1

    # Megacore (v7x has 2 TensorCores): if everything collapsed into a single
    # grid step but the tensor is non-trivial, split so both cores get work.
    if tb >= B and tn >= N and B * N * row_bytes > (1 << 20):
        if B > 1:
            tb = -(-B // 2)
        elif N > align:
            tn = max(align, ((-(-N // 2)) // align) * align)
    return tb, tn


def pixel_shuffle_linear(x, upscale_factor, *, tile_budget_bytes=8 * 1024 * 1024):
    """Pallas TPU implementation of PixelShuffleLinear.forward.

    x: (B, N, C) with C divisible by prod(upscale_factor).
    Returns: (B, N * scale_num, C // scale_num), same dtype as x.
    """
    if isinstance(upscale_factor, int):
        upscale_factor = (upscale_factor, upscale_factor)
    scale_num = int(math.prod(int(f) for f in upscale_factor))

    B, N, C = x.shape
    assert C % scale_num == 0, "channels must be divisible by prod(upscale_factor)"
    n_out = C // scale_num

    itemsize = jnp.dtype(x.dtype).itemsize
    phys_vmem = _physical_vmem_bytes()
    # 4 live buffers (double-buffered input + double-buffered output), so keep
    # each tile <= phys_vmem / 8 (total <= half of physical VMEM, also inside
    # v7x's smaller 64 MiB).  Default 8 MiB tiles -> ~32 MiB live.
    tile_budget = min(int(tile_budget_bytes), phys_vmem // 8)

    tb, tn = _pick_tiles(B, N, C, itemsize, tile_budget)
    grid = (pl.cdiv(B, tb), pl.cdiv(N, tn))

    tile_bytes = tb * tn * C * itemsize       # input tile == output tile bytes
    # Explicit scoped-VMEM limit (v5e default is only 16 MiB): 4 live tiles
    # plus headroom for compiler scratch, capped at physical VMEM.
    vmem_limit = int(min(phys_vmem, 4 * tile_bytes + (8 << 20)))

    kernel = functools.partial(_pixel_shuffle_kernel,
                               scale_num=scale_num, n_out=n_out)

    in_spec = pl.BlockSpec(
        (tb, tn, C),
        # x window: [bi*tb:(bi+1)*tb, ni*tn:(ni+1)*tn, :]  (row-contiguous C)
        lambda bi, ni: (bi, ni, 0),
    )
    out_spec = pl.BlockSpec(
        (tb, scale_num, tn, n_out),
        # out4 window: [bi*tb:(bi+1)*tb, :, ni*tn:(ni+1)*tn, :]
        lambda bi, ni: (bi, 0, ni, 0),
    )

    # TODO(synk): if profiling on v5e shows exposed DMA gaps, sweep
    # pipeline_mode=pl.Buffered(3) on the input BlockSpec (plenty of VMEM there).
    out4 = pl.pallas_call(
        kernel,
        out_shape=jax.ShapeDtypeStruct((B, scale_num, N, n_out), x.dtype),
        grid_spec=pltpu.PrefetchScalarGridSpec(
            num_scalar_prefetch=0,
            grid=grid,
            in_specs=[in_spec],
            out_specs=out_spec,
        ),
        compiler_params=pltpu.CompilerParams(
            # Every grid point writes a disjoint output tile -> fully parallel
            # (lets v7x's 2 TensorCores shard the grid; neutral on v5e/v6e).
            dimension_semantics=("parallel", "parallel"),
            vmem_limit_bytes=vmem_limit,
        ),
        cost_estimate=pl.CostEstimate(
            flops=0,
            transcendentals=0,
            bytes_accessed=int(2 * x.size * itemsize),
        ),
    )(x)

    # (B, scale_num, N, n_out) -> (B, scale_num*N, n_out): contiguous, free.
    return out4.reshape(B, scale_num * N, n_out)


def _reference(x, upscale_factor):
    """Pure-JAX mirror of the PyTorch forward."""
    if isinstance(upscale_factor, int):
        upscale_factor = (upscale_factor, upscale_factor)
    s = int(math.prod(int(f) for f in upscale_factor))
    B, N, C = x.shape
    n_out = C // s
    return (x.reshape(B, N, s, n_out)
             .transpose(0, 2, 1, 3)
             .reshape(B, N * s, n_out))


if __name__ == "__main__":
    key = jax.random.PRNGKey(0)
    k1, k2, k3 = jax.random.split(key, 3)

    # Case 1: (B, component, channels) = (2, 8, 512), upscale_factor = 2
    #   -> scale_num = 4, nOut = 128, output (2, 32, 128).
    x1 = jax.random.normal(k1, (2, 8, 4 * 128), dtype=jnp.float32)
    out1 = jax.block_until_ready(pixel_shuffle_linear(x1, 2))
    ref1 = _reference(x1, 2)
    assert out1.shape == (2, 32, 128), out1.shape
    assert jnp.array_equal(out1, ref1), "mismatch vs reference (f32 case)"

    # Case 2: bf16 input, tuple upscale factor (1, 2) -> scale_num = 2,
    #   (2, 16, 256) -> (2, 32, 128); bf16 stays bf16 end-to-end (pure copy).
    x2 = jax.random.normal(k2, (2, 16, 2 * 128), dtype=jnp.bfloat16)
    out2 = jax.block_until_ready(pixel_shuffle_linear(x2, (1, 2)))
    ref2 = _reference(x2, (1, 2))
    assert out2.shape == (2, 32, 128), out2.shape
    assert jnp.array_equal(out2, ref2), "mismatch vs reference (bf16 case)"

    # Case 3: exercise cdiv tiling + masked edge blocks (N = 40 is not a
    # multiple of the chosen tile) by forcing a deliberately tiny budget.
    x3 = jax.random.normal(k3, (2, 40, 4 * 128), dtype=jnp.float32)
    out3 = jax.block_until_ready(
        pixel_shuffle_linear(x3, 2, tile_budget_bytes=64 * 1024))
    ref3 = _reference(x3, 2)
    assert out3.shape == (2, 160, 128), out3.shape
    assert jnp.array_equal(out3, ref3), "mismatch vs reference (edge-tile case)"

    print("KERNEL_OK")
</pallas_src>

<mosaic_0001>
module attributes {stable_mosaic.version = 11 : i64} {
  func.func @_pixel_shuffle_kernel(%arg0: i32, %arg1: i32, %arg2: memref<2x8x512xf32, #tpu.memory_space<vmem>>, %arg3: memref<2x4x8x128xf32, #tpu.memory_space<vmem>>) attributes {dimension_semantics = [#tpu.dimension_semantics<parallel>, #tpu.dimension_semantics<parallel>], iteration_bounds = array<i64: 1, 1>, scalar_prefetch = 0 : i64, scratch_operands = 0 : i64, tpu.core_type = #tpu.core_type<tc>, window_params = [{transform_indices = @transform_0, window_bounds = array<i64: 2, 8, 512>}, {transform_indices = @transform_1, window_bounds = array<i64: 2, 4, 8, 128>}]} {
    %c0 = arith.constant 0 : index
    %c0_0 = arith.constant 0 : index
    %c0_1 = arith.constant 0 : index
    %0 = vector.load %arg2[%c0, %c0_0, %c0_1] : memref<2x8x512xf32, #tpu.memory_space<vmem>>, vector<2x8x128xf32>
    %c0_2 = arith.constant 0 : index
    %c0_3 = arith.constant 0 : index
    %c0_4 = arith.constant 0 : index
    %c0_5 = arith.constant 0 : index
    %1 = vector.load %arg3[%c0_2, %c0_3, %c0_4, %c0_5] : memref<2x4x8x128xf32, #tpu.memory_space<vmem>>, vector<2x1x8x128xf32>
    %2 = vector.shape_cast %1 : vector<2x1x8x128xf32> to vector<2x8x128xf32>
    %3 = vector.shape_cast %0 : vector<2x8x128xf32> to vector<2x1x8x128xf32>
    tpu.vector_store %arg3[%c0_2, %c0_3, %c0_4, %c0_5], %3 {strides = array<i32>} : memref<2x4x8x128xf32, #tpu.memory_space<vmem>>, vector<2x1x8x128xf32>,
    %c0_6 = arith.constant 0 : index
    %c0_7 = arith.constant 0 : index
    %c128 = arith.constant 128 : index
    %4 = vector.load %arg2[%c0_6, %c0_7, %c128] : memref<2x8x512xf32, #tpu.memory_space<vmem>>, vector<2x8x128xf32>
    %c0_8 = arith.constant 0 : index
    %c1 = arith.constant 1 : index
    %c0_9 = arith.constant 0 : index
    %c0_10 = arith.constant 0 : index
    %5 = vector.load %arg3[%c0_8, %c1, %c0_9, %c0_10] : memref<2x4x8x128xf32, #tpu.memory_space<vmem>>, vector<2x1x8x128xf32>
    %6 = vector.shape_cast %5 : vector<2x1x8x128xf32> to vector<2x8x128xf32>
    %7 = vector.shape_cast %4 : vector<2x8x128xf32> to vector<2x1x8x128xf32>
    tpu.vector_store %arg3[%c0_8, %c1, %c0_9, %c0_10], %7 {strides = array<i32>} : memref<2x4x8x128xf32, #tpu.memory_space<vmem>>, vector<2x1x8x128xf32>,
    %c0_11 = arith.constant 0 : index
    %c0_12 = arith.constant 0 : index
    %c256 = arith.constant 256 : index
    %8 = vector.load %arg2[%c0_11, %c0_12, %c256] : memref<2x8x512xf32, #tpu.memory_space<vmem>>, vector<2x8x128xf32>
    %c0_13 = arith.constant 0 : index
    %c2 = arith.constant 2 : index
    %c0_14 = arith.constant 0 : index
    %c0_15 = arith.constant 0 : index
    %9 = vector.load %arg3[%c0_13, %c2, %c0_14, %c0_15] : memref<2x4x8x128xf32, #tpu.memory_space<vmem>>, vector<2x1x8x128xf32>
    %10 = vector.shape_cast %9 : vector<2x1x8x128xf32> to vector<2x8x128xf32>
    %11 = vector.shape_cast %8 : vector<2x8x128xf32> to vector<2x1x8x128xf32>
    tpu.vector_store %arg3[%c0_13, %c2, %c0_14, %c0_15], %11 {strides = array<i32>} : memref<2x4x8x128xf32, #tpu.memory_space<vmem>>, vector<2x1x8x128xf32>,
    %c0_16 = arith.constant 0 : index
    %c0_17 = arith.constant 0 : index
    %c384 = arith.constant 384 : index
    %12 = vector.load %arg2[%c0_16, %c0_17, %c384] : memref<2x8x512xf32, #tpu.memory_space<vmem>>, vector<2x8x128xf32>
    %c0_18 = arith.constant 0 : index
    %c3 = arith.constant 3 : index
    %c0_19 = arith.constant 0 : index
    %c0_20 = arith.constant 0 : index
    %13 = vector.load %arg3[%c0_18, %c3, %c0_19, %c0_20] : memref<2x4x8x128xf32, #tpu.memory_space<vmem>>, vector<2x1x8x128xf32>
    %14 = vector.shape_cast %13 : vector<2x1x8x128xf32> to vector<2x8x128xf32>
    %15 = vector.shape_cast %12 : vector<2x8x128xf32> to vector<2x1x8x128xf32>
    tpu.vector_store %arg3[%c0_18, %c3, %c0_19, %c0_20], %15 {strides = array<i32>} : memref<2x4x8x128xf32, #tpu.memory_space<vmem>>, vector<2x1x8x128xf32>,
    return
  }
  func.func @transform_0(%arg0: i32, %arg1: i32) -> (i32, i32, i32) {
    %c0_i32 = arith.constant 0 : i32
    %c0_i32_0 = arith.constant 0 : i32
    return %arg0, %arg1, %c0_i32 : i32, i32, i32
  }
  func.func @transform_1(%arg0: i32, %arg1: i32) -> (i32, i32, i32, i32) {
    %c0_i32 = arith.constant 0 : i32
    %c0_i32_0 = arith.constant 0 : i32
    %c0_i32_1 = arith.constant 0 : i32
    return %arg0, %c0_i32, %arg1, %c0_i32_0 : i32, i32, i32, i32
  }
}

</mosaic_0001>

<llo_original>
// kernel: tpu_custom_call.1
$region0: #{tpu_custom_call.1}
  #allocation0 [shape = 'u32[]', space=smem, size = 0x4, offset = 0x4, fixed_abs, tag = 'smem constant byte address 0x4 - core index']
  #allocation1 [shape = 'u32[144,128]{1,0:T(1,128)}', space=vmem, size = 0x12000, scoped, tag = 'internal scratch']
  %s0 = inlined_call_operand.hbm [shape: f32[2,8,512], index: 0, kind: input, shape index: {}]
  %s1 = inlined_call_operand.hbm [shape: f32[2,4,8,128], index: 1, kind: output, shape index: {}]
  %s2 = sld [smem:[#allocation0]]
  $region18: #{tpu_custom_call.1} parent=0
    _
  %s4 = ssub.s32 1, %s2
  %s5 = scalar_select 0, %s4, %s2
  $region1: #{tpu_custom_call.1} parent=0
    #allocation2 [shape = 'u8[32768]{0}', space=vmem, size = 0x8000, scoped, tag = 'input window, operand 0, single buffered']
    #allocation3 [shape = 's32[1]{0}', space=sflag, size = 0x4, scoped, tag = 'scoped memory for tpu_custom_call.1']
    #allocation4 [shape = 's32[1]{0}', space=sflag, size = 0x4, scoped, tag = 'scoped memory for tpu_custom_call.1']
    #allocation5 [shape = 'u8[32768]{0}', space=vmem, size = 0x8000, scoped, tag = 'output window, operand 0, single buffered']
    %6 = vsyncpa [#allocation3], 0
    %7 = vsyncpa [#allocation4], 0
    // Predicated region
    $region2: #{tpu_custom_call.1} parent=1 // pred_check
      _
    $region3: #{tpu_custom_call.1} parent=1 // pred_check_branch
      %9 = sbr.rel (0) target = $region5
    $region4: #{tpu_custom_call.1} parent=1 // pred_region
      %s11 = ssub.s32 1024, 1024
      %12 = vsyncadd [#allocation3], %s11
      %s13 = sshll.u32 [#allocation2], 4
      %s14 = int_to_ptr.vmem [resolvable:$true] %s13
      %19 = dma.hbm_to_vmem [thread:$0]  %s0, 1024, %s14, [#allocation3], 512, 512, 32
    $region5: #{tpu_custom_call.1} parent=1 // pred_fallthru
      _
    // Predicated region
    $region6: #{tpu_custom_call.1} parent=1 // pred_check
      _
    $region7: #{tpu_custom_call.1} parent=1 // pred_check_branch
      %21 = sbr.rel (0) target = $region9
    $region8: #{tpu_custom_call.1} parent=1 // pred_region
      %22 = dma.done [#allocation3], 1024
    $region9: #{tpu_custom_call.1} parent=1 // pred_fallthru
      _
    %v23 = vld [vmem:[#allocation2] sm:$0xff]
    %v24 = vld [vmem:[#allocation2 + $0x20] sm:$0xff]
    %25 = vst [vmem:[#allocation5] sm:$0xff] %v23
    %26 = vst [vmem:[#allocation5 + $0x20] sm:$0xff] %v24
    %v27 = vld [vmem:[#allocation2 + $0x8] sm:$0xff]
    %v28 = vld [vmem:[#allocation2 + $0x28] sm:$0xff]
    %s29 = scalar_lea.vmem [#allocation5], 8
    %30 = vst [vmem:[%s29] sm:$0xff] %v27
    %31 = vst [vmem:[%s29 + $0x20] sm:$0xff] %v28
    %v32 = vld [vmem:[#allocation2 + $0x10] sm:$0xff]
    %v33 = vld [vmem:[#allocation2 + $0x30] sm:$0xff]
    %s34 = scalar_lea.vmem [#allocation5], 16
    %35 = vst [vmem:[%s34] sm:$0xff] %v32
    %36 = vst [vmem:[%s34 + $0x20] sm:$0xff] %v33
    %v37 = vld [vmem:[#allocation2 + $0x18] sm:$0xff]
    %v38 = vld [vmem:[#allocation2 + $0x38] sm:$0xff]
    %s39 = scalar_lea.vmem [#allocation5], 24
    %40 = vst [vmem:[%s39] sm:$0xff] %v37
    %41 = vst [vmem:[%s39 + $0x20] sm:$0xff] %v38
    // Predicated region
    $region10: #{tpu_custom_call.1} parent=1 // pred_check
      _
    $region11: #{tpu_custom_call.1} parent=1 // pred_check_branch
      %43 = sbr.rel (0) target = $region13
    $region12: #{tpu_custom_call.1} parent=1 // pred_region
      %s45 = ssub.s32 1024, 1024
      %46 = vsyncadd [#allocation4], %s45
      %s47 = sshll.u32 [#allocation5], 4
      %s48 = int_to_ptr.vmem [resolvable:$true] %s47
      %53 = dma.vmem_to_hbm [thread:$0]  %s48, 1024, %s1, [#allocation4], 128, 128, 8
    $region13: #{tpu_custom_call.1} parent=1 // pred_fallthru
      _
    // Predicated region
    $region14: #{tpu_custom_call.1} parent=1 // pred_check
      _
    $region15: #{tpu_custom_call.1} parent=1 // pred_check_branch
      %55 = sbr.rel (0) target = $region17
    $region16: #{tpu_custom_call.1} parent=1 // pred_region
      %56 = dma.done [#allocation4], 1024
    $region17: #{tpu_custom_call.1} parent=1 // pred_fallthru
      _
    %57 = vsyncpa [#allocation3], 1
    %58 = vsyncpa [#allocation4], 1

</llo_original>
